<compile_context>
chip_gen: v6e
topology: v6e:2x2x1
jax: 0.10.0
libtpu: 0.0.40
codegen_flags: <defaults>
</compile_context>

<pallas_src>
import jax
import jax.numpy as jnp
from jax import lax
from jax.experimental import pallas as pl
from jax.experimental.pallas import tpu as pltpu

INPUT_SIZE = 256
HIDDEN_SIZE = 128
_SUB = 8  # output rows accumulated per unmasked (8,128) store / unroll factor


def _rnn_kernel(x_ref, h0_ref, wih_ref, whh_ref, bih_ref, bhh_ref,
                out_ref, h_scr):
    """One sequence block.

    x_ref:   (block_s, I) f32      out_ref: (block_s, H) f32
    h0_ref:  (1, H) f32            h_scr:   VMEM (1, H) f32 (carried over grid)
    wih_ref: (I, H) f32 (W_ih^T)   whh_ref: (H, H) f32 (W_hh^T)
    bih_ref / bhh_ref: (1, H) f32
    """
    # Initialize the carried hidden state on the first sequence block.
    @pl.when(pl.program_id(0) == 0)
    def _():
        h_scr[...] = h0_ref[...]

    # Batched input projection for the whole block on the MXU, biases folded.
    # Written directly into out_ref: row t is always read (as pre-activation)
    # before it is overwritten with h_t, so no xproj scratch is needed.
    out_ref[...] = (
        jnp.dot(x_ref[...], wih_ref[...], preferred_element_type=jnp.float32)
        + bih_ref[...] + bhh_ref[...]
    )

    whh = whh_ref[...]                 # (H, H), loaded once per block
    block_s = out_ref.shape[0]         # static
    num_sub = block_s // _SUB          # static

    # TODO(synk): holding W_hh in the MXU weight registers across steps via
    # pltpu.matmul_push_rhs / matmul_acc_lhs / matmul_pop would amortize the
    # per-step weight push; kept as jnp.dot for portable, robust lowering.
    def sub_step(s, h):
        base = pl.multiple_of(s * _SUB, _SUB)
        proj = out_ref[pl.ds(base, _SUB), :]          # one full (8,128) load
        rows = []
        for r in range(_SUB):                         # unrolled: visible to scheduler
            h = jnp.tanh(
                proj[r:r + 1, :]
                + jnp.dot(h, whh, preferred_element_type=jnp.float32))
            rows.append(h)
        # One unmasked (8,128) store instead of 8 masked 1-sublane stores.
        out_ref[pl.ds(base, _SUB), :] = jnp.concatenate(rows, axis=0)
        return h

    h_final = lax.fori_loop(0, num_sub, sub_step, h_scr[...],
                            unroll=(num_sub <= 4))
    h_scr[...] = h_final               # carry hidden state to the next block


def rnn_forward(x, h0, w_ih, w_hh, b_ih, b_hh, *, block_s=None):
    """x: (S, 256) f32; h0: (1, 1, 128) f32 (PyTorch h0 layout).

    Returns output of shape (S, 128) f32, matching module.forward(input, hidden).
    """
    S = x.shape[0]
    if block_s is None:
        block_s = 256 if S >= 256 else -(-S // _SUB) * _SUB
    assert block_s % _SUB == 0 and block_s > 0
    S_pad = -(-S // block_s) * block_s
    x32 = x.astype(jnp.float32)
    if S_pad != S:
        # Padded tail rows produce garbage hidden states *after* row S-1, which
        # never feed back into rows < S and are sliced away below.
        x32 = jnp.pad(x32, ((0, S_pad - S), (0, 0)))
    num_blocks = S_pad // block_s

    h0_2d = h0.reshape(1, HIDDEN_SIZE).astype(jnp.float32)
    wih_t = jnp.transpose(w_ih).astype(jnp.float32)   # (I, H)
    whh_t = jnp.transpose(w_hh).astype(jnp.float32)   # (H, H)
    bih = b_ih.reshape(1, HIDDEN_SIZE).astype(jnp.float32)
    bhh = b_hh.reshape(1, HIDDEN_SIZE).astype(jnp.float32)

    out = pl.pallas_call(
        _rnn_kernel,
        out_shape=jax.ShapeDtypeStruct((S_pad, HIDDEN_SIZE), jnp.float32),
        grid_spec=pltpu.PrefetchScalarGridSpec(
            num_scalar_prefetch=0,
            grid=(num_blocks,),
            in_specs=[
                pl.BlockSpec((block_s, INPUT_SIZE), lambda i: (i, 0)),      # x
                pl.BlockSpec((1, HIDDEN_SIZE), lambda i: (0, 0)),           # h0
                pl.BlockSpec((INPUT_SIZE, HIDDEN_SIZE), lambda i: (0, 0)),  # W_ih^T
                pl.BlockSpec((HIDDEN_SIZE, HIDDEN_SIZE), lambda i: (0, 0)), # W_hh^T
                pl.BlockSpec((1, HIDDEN_SIZE), lambda i: (0, 0)),           # b_ih
                pl.BlockSpec((1, HIDDEN_SIZE), lambda i: (0, 0)),           # b_hh
            ],
            out_specs=pl.BlockSpec((block_s, HIDDEN_SIZE), lambda i: (i, 0)),
            scratch_shapes=[pltpu.VMEM((1, HIDDEN_SIZE), jnp.float32)],
        ),
        compiler_params=pltpu.CompilerParams(
            dimension_semantics=("arbitrary",),   # sequential recurrence over S
        ),
    )(x32, h0_2d, wih_t, whh_t, bih, bhh)
    return out[:S]


def _reference(x, h0, w_ih, w_hh, b_ih, b_hh):
    """Pure-JAX reference for the tanh RNN (same math as torch nn.RNN)."""
    def step(h, x_t):
        h_new = jnp.tanh(x_t @ w_ih.T + b_ih + h @ w_hh.T + b_hh)
        return h_new, h_new
    _, ys = lax.scan(step, h0.reshape(HIDDEN_SIZE), x)
    return ys


if __name__ == "__main__":
    key = jax.random.PRNGKey(0)
    k_x, k_h, k_wih, k_whh, k_bih, k_bhh, k_x2 = jax.random.split(key, 7)

    # Deterministic parameter init, PyTorch-style U(-1/sqrt(H), 1/sqrt(H)).
    bound = 1.0 / jnp.sqrt(jnp.float32(HIDDEN_SIZE))
    w_ih = jax.random.uniform(k_wih, (HIDDEN_SIZE, INPUT_SIZE), jnp.float32, -bound, bound)
    w_hh = jax.random.uniform(k_whh, (HIDDEN_SIZE, HIDDEN_SIZE), jnp.float32, -bound, bound)
    b_ih = jax.random.uniform(k_bih, (HIDDEN_SIZE,), jnp.float32, -bound, bound)
    b_hh = jax.random.uniform(k_bhh, (HIDDEN_SIZE,), jnp.float32, -bound, bound)

    h0 = jax.random.normal(k_h, (1, 1, HIDDEN_SIZE), jnp.float32)  # (num_layers, batch, H)

    # Main check: S = 8 (single block, fully unrolled recurrence).
    S = 8
    x = jax.random.normal(k_x, (S, INPUT_SIZE), jnp.float32)       # seqlen x featurelen
    out = jax.block_until_ready(rnn_forward(x, h0, w_ih, w_hh, b_ih, b_hh))
    ref = _reference(x, h0, w_ih, w_hh, b_ih, b_hh)
    assert out.shape == (S, HIDDEN_SIZE), out.shape
    assert jnp.allclose(out, ref, atol=1e-5, rtol=1e-5), float(jnp.max(jnp.abs(out - ref)))

    # Secondary check: multi-block grid + tail padding (S=20, block_s=8).
    S2 = 20
    x2 = jax.random.normal(k_x2, (S2, INPUT_SIZE), jnp.float32)
    out2 = jax.block_until_ready(rnn_forward(x2, h0, w_ih, w_hh, b_ih, b_hh, block_s=8))
    ref2 = _reference(x2, h0, w_ih, w_hh, b_ih, b_hh)
    assert out2.shape == (S2, HIDDEN_SIZE), out2.shape
    assert jnp.allclose(out2, ref2, atol=1e-5, rtol=1e-5), float(jnp.max(jnp.abs(out2 - ref2)))

    print("KERNEL_OK")
</pallas_src>

<mosaic_0001>
module attributes {stable_mosaic.version = 11 : i64} {
  func.func @_rnn_kernel(%arg0: i32, %arg1: memref<8x256xf32, #tpu.memory_space<vmem>>, %arg2: memref<1x128xf32, #tpu.memory_space<vmem>>, %arg3: memref<256x128xf32, #tpu.memory_space<vmem>>, %arg4: memref<128x128xf32, #tpu.memory_space<vmem>>, %arg5: memref<1x128xf32, #tpu.memory_space<vmem>>, %arg6: memref<1x128xf32, #tpu.memory_space<vmem>>, %arg7: memref<8x128xf32, #tpu.memory_space<vmem>>, %arg8: memref<1x128xf32, #tpu.memory_space<vmem>>) attributes {dimension_semantics = [#tpu.dimension_semantics<arbitrary>], iteration_bounds = array<i64: 1>, scalar_prefetch = 0 : i64, scratch_operands = 1 : i64, tpu.core_type = #tpu.core_type<tc>, window_params = [{transform_indices = @transform_0, window_bounds = array<i64: 8, 256>}, {pipeline_mode = #tpu.pipeline_mode<synchronous>, transform_indices = @transform_1, window_bounds = array<i64: 1, 128>}, {pipeline_mode = #tpu.pipeline_mode<synchronous>, transform_indices = @transform_2, window_bounds = array<i64: 256, 128>}, {pipeline_mode = #tpu.pipeline_mode<synchronous>, transform_indices = @transform_3, window_bounds = array<i64: 128, 128>}, {pipeline_mode = #tpu.pipeline_mode<synchronous>, transform_indices = @transform_4, window_bounds = array<i64: 1, 128>}, {pipeline_mode = #tpu.pipeline_mode<synchronous>, transform_indices = @transform_5, window_bounds = array<i64: 1, 128>}, {transform_indices = @transform_6, window_bounds = array<i64: 8, 128>}]} {
    %c0_i32 = arith.constant 0 : i32
    %0 = arith.cmpi eq, %arg0, %c0_i32 : i32
    %1 = arith.extui %0 : i1 to i32
    %c0_i32_0 = arith.constant 0 : i32
    %2 = arith.cmpi ne, %1, %c0_i32_0 : i32
    scf.if %2 {
      %c0_27 = arith.constant 0 : index
      %c0_28 = arith.constant 0 : index
      %55 = vector.load %arg2[%c0_27, %c0_28] : memref<1x128xf32, #tpu.memory_space<vmem>>, vector<1x128xf32>
      %c0_29 = arith.constant 0 : index
      %c0_30 = arith.constant 0 : index
      %56 = vector.load %arg8[%c0_29, %c0_30] : memref<1x128xf32, #tpu.memory_space<vmem>>, vector<1x128xf32>
      tpu.vector_store %arg8[%c0_29, %c0_30], %55 {strides = array<i32>} : memref<1x128xf32, #tpu.memory_space<vmem>>, vector<1x128xf32>,
    } else {
    }
    %c0 = arith.constant 0 : index
    %c0_1 = arith.constant 0 : index
    %3 = vector.load %arg1[%c0, %c0_1] : memref<8x256xf32, #tpu.memory_space<vmem>>, vector<8x256xf32>
    %c0_2 = arith.constant 0 : index
    %c0_3 = arith.constant 0 : index
    %4 = vector.load %arg3[%c0_2, %c0_3] : memref<256x128xf32, #tpu.memory_space<vmem>>, vector<256x128xf32>
    %cst = arith.constant dense<0.000000e+00> : vector<8x128xf32>
    %5 = tpu.matmul %3, %4, %cst {dimension_numbers = #tpu.dot_dimension_numbers<[1], [0], [0], [1], [0, 0, 1, 1], [], []>} : vector<8x256xf32>, vector<256x128xf32>, vector<8x128xf32> -> vector<8x128xf32>
    %c0_4 = arith.constant 0 : index
    %c0_5 = arith.constant 0 : index
    %6 = vector.load %arg5[%c0_4, %c0_5] : memref<1x128xf32, #tpu.memory_space<vmem>>, vector<1x128xf32>
    %7 = vector.broadcast %6 : vector<1x128xf32> to vector<8x128xf32>
    %8 = arith.addf %5, %7 : vector<8x128xf32>
    %c0_6 = arith.constant 0 : index
    %c0_7 = arith.constant 0 : index
    %9 = vector.load %arg6[%c0_6, %c0_7] : memref<1x128xf32, #tpu.memory_space<vmem>>, vector<1x128xf32>
    %10 = vector.broadcast %9 : vector<1x128xf32> to vector<8x128xf32>
    %11 = arith.addf %8, %10 : vector<8x128xf32>
    %c0_8 = arith.constant 0 : index
    %c0_9 = arith.constant 0 : index
    %12 = vector.load %arg7[%c0_8, %c0_9] : memref<8x128xf32, #tpu.memory_space<vmem>>, vector<8x128xf32>
    tpu.vector_store %arg7[%c0_8, %c0_9], %11 {strides = array<i32>} : memref<8x128xf32, #tpu.memory_space<vmem>>, vector<8x128xf32>,
    %c0_10 = arith.constant 0 : index
    %c0_11 = arith.constant 0 : index
    %13 = vector.load %arg4[%c0_10, %c0_11] : memref<128x128xf32, #tpu.memory_space<vmem>>, vector<128x128xf32>
    %c0_12 = arith.constant 0 : index
    %c0_13 = arith.constant 0 : index
    %14 = vector.load %arg8[%c0_12, %c0_13] : memref<1x128xf32, #tpu.memory_space<vmem>>, vector<1x128xf32>
    %c0_i32_14 = arith.constant 0 : i32
    %c8_i32 = arith.constant 8 : i32
    %15 = arith.muli %c0_i32_14, %c8_i32 : i32
    %16 = tpu.assume_multiple %15, 8 : i32
    %17 = arith.index_cast %16 : i32 to index
    %c0_15 = arith.constant 0 : index
    %18 = vector.load %arg7[%17, %c0_15] : memref<8x128xf32, #tpu.memory_space<vmem>>, vector<8x128xf32>
    %19 = vector.extract_strided_slice %18 {offsets = [0, 0], sizes = [1, 128], strides = [1, 1]} : vector<8x128xf32> to vector<1x128xf32>
    %cst_16 = arith.constant dense<0.000000e+00> : vector<1x128xf32>
    %20 = tpu.matmul %14, %13, %cst_16 {dimension_numbers = #tpu.dot_dimension_numbers<[1], [0], [0], [1], [0, 0, 1, 1], [], []>} : vector<1x128xf32>, vector<128x128xf32>, vector<1x128xf32> -> vector<1x128xf32>
    %21 = arith.addf %19, %20 : vector<1x128xf32>
    %22 = math.tanh %21 : vector<1x128xf32>
    %23 = vector.extract_strided_slice %18 {offsets = [1, 0], sizes = [1, 128], strides = [1, 1]} : vector<8x128xf32> to vector<1x128xf32>
    %cst_17 = arith.constant dense<0.000000e+00> : vector<1x128xf32>
    %24 = tpu.matmul %22, %13, %cst_17 {dimension_numbers = #tpu.dot_dimension_numbers<[1], [0], [0], [1], [0, 0, 1, 1], [], []>} : vector<1x128xf32>, vector<128x128xf32>, vector<1x128xf32> -> vector<1x128xf32>
    %25 = arith.addf %23, %24 : vector<1x128xf32>
    %26 = math.tanh %25 : vector<1x128xf32>
    %27 = vector.extract_strided_slice %18 {offsets = [2, 0], sizes = [1, 128], strides = [1, 1]} : vector<8x128xf32> to vector<1x128xf32>
    %cst_18 = arith.constant dense<0.000000e+00> : vector<1x128xf32>
    %28 = tpu.matmul %26, %13, %cst_18 {dimension_numbers = #tpu.dot_dimension_numbers<[1], [0], [0], [1], [0, 0, 1, 1], [], []>} : vector<1x128xf32>, vector<128x128xf32>, vector<1x128xf32> -> vector<1x128xf32>
    %29 = arith.addf %27, %28 : vector<1x128xf32>
    %30 = math.tanh %29 : vector<1x128xf32>
    %31 = vector.extract_strided_slice %18 {offsets = [3, 0], sizes = [1, 128], strides = [1, 1]} : vector<8x128xf32> to vector<1x128xf32>
    %cst_19 = arith.constant dense<0.000000e+00> : vector<1x128xf32>
    %32 = tpu.matmul %30, %13, %cst_19 {dimension_numbers = #tpu.dot_dimension_numbers<[1], [0], [0], [1], [0, 0, 1, 1], [], []>} : vector<1x128xf32>, vector<128x128xf32>, vector<1x128xf32> -> vector<1x128xf32>
    %33 = arith.addf %31, %32 : vector<1x128xf32>
    %34 = math.tanh %33 : vector<1x128xf32>
    %35 = vector.extract_strided_slice %18 {offsets = [4, 0], sizes = [1, 128], strides = [1, 1]} : vector<8x128xf32> to vector<1x128xf32>
    %cst_20 = arith.constant dense<0.000000e+00> : vector<1x128xf32>
    %36 = tpu.matmul %34, %13, %cst_20 {dimension_numbers = #tpu.dot_dimension_numbers<[1], [0], [0], [1], [0, 0, 1, 1], [], []>} : vector<1x128xf32>, vector<128x128xf32>, vector<1x128xf32> -> vector<1x128xf32>
    %37 = arith.addf %35, %36 : vector<1x128xf32>
    %38 = math.tanh %37 : vector<1x128xf32>
    %39 = vector.extract_strided_slice %18 {offsets = [5, 0], sizes = [1, 128], strides = [1, 1]} : vector<8x128xf32> to vector<1x128xf32>
    %cst_21 = arith.constant dense<0.000000e+00> : vector<1x128xf32>
    %40 = tpu.matmul %38, %13, %cst_21 {dimension_numbers = #tpu.dot_dimension_numbers<[1], [0], [0], [1], [0, 0, 1, 1], [], []>} : vector<1x128xf32>, vector<128x128xf32>, vector<1x128xf32> -> vector<1x128xf32>
    %41 = arith.addf %39, %40 : vector<1x128xf32>
    %42 = math.tanh %41 : vector<1x128xf32>
    %43 = vector.extract_strided_slice %18 {offsets = [6, 0], sizes = [1, 128], strides = [1, 1]} : vector<8x128xf32> to vector<1x128xf32>
    %cst_22 = arith.constant dense<0.000000e+00> : vector<1x128xf32>
    %44 = tpu.matmul %42, %13, %cst_22 {dimension_numbers = #tpu.dot_dimension_numbers<[1], [0], [0], [1], [0, 0, 1, 1], [], []>} : vector<1x128xf32>, vector<128x128xf32>, vector<1x128xf32> -> vector<1x128xf32>
    %45 = arith.addf %43, %44 : vector<1x128xf32>
    %46 = math.tanh %45 : vector<1x128xf32>
    %47 = vector.extract_strided_slice %18 {offsets = [7, 0], sizes = [1, 128], strides = [1, 1]} : vector<8x128xf32> to vector<1x128xf32>
    %cst_23 = arith.constant dense<0.000000e+00> : vector<1x128xf32>
    %48 = tpu.matmul %46, %13, %cst_23 {dimension_numbers = #tpu.dot_dimension_numbers<[1], [0], [0], [1], [0, 0, 1, 1], [], []>} : vector<1x128xf32>, vector<128x128xf32>, vector<1x128xf32> -> vector<1x128xf32>
    %49 = arith.addf %47, %48 : vector<1x128xf32>
    %50 = math.tanh %49 : vector<1x128xf32>
    %51 = tpu.concatenate %22, %26, %30, %34, %38, %42, %46, %50 in 0 : vector<1x128xf32>, vector<1x128xf32>, vector<1x128xf32>, vector<1x128xf32>, vector<1x128xf32>, vector<1x128xf32>, vector<1x128xf32>, vector<1x128xf32> -> vector<8x128xf32>
    %52 = arith.index_cast %16 : i32 to index
    %c0_24 = arith.constant 0 : index
    %53 = vector.load %arg7[%52, %c0_24] : memref<8x128xf32, #tpu.memory_space<vmem>>, vector<8x128xf32>
    tpu.vector_store %arg7[%52, %c0_24], %51 {strides = array<i32>} : memref<8x128xf32, #tpu.memory_space<vmem>>, vector<8x128xf32>,
    %c1_i32 = arith.constant 1 : i32
    %c0_25 = arith.constant 0 : index
    %c0_26 = arith.constant 0 : index
    %54 = vector.load %arg8[%c0_25, %c0_26] : memref<1x128xf32, #tpu.memory_space<vmem>>, vector<1x128xf32>
    tpu.vector_store %arg8[%c0_25, %c0_26], %50 {strides = array<i32>} : memref<1x128xf32, #tpu.memory_space<vmem>>, vector<1x128xf32>,
    return
  }
  func.func @transform_0(%arg0: i32) -> (i32, i32) {
    %c0_i32 = arith.constant 0 : i32
    %c0_i32_0 = arith.constant 0 : i32
    return %arg0, %c0_i32 : i32, i32
  }
  func.func @transform_1(%arg0: i32) -> (i32, i32) {
    %c0_i32 = arith.constant 0 : i32
    %c0_i32_0 = arith.constant 0 : i32
    %c0_i32_1 = arith.constant 0 : i32
    return %c0_i32, %c0_i32_0 : i32, i32
  }
  func.func @transform_2(%arg0: i32) -> (i32, i32) {
    %c0_i32 = arith.constant 0 : i32
    %c0_i32_0 = arith.constant 0 : i32
    %c0_i32_1 = arith.constant 0 : i32
    return %c0_i32, %c0_i32_0 : i32, i32
  }
  func.func @transform_3(%arg0: i32) -> (i32, i32) {
    %c0_i32 = arith.constant 0 : i32
    %c0_i32_0 = arith.constant 0 : i32
    %c0_i32_1 = arith.constant 0 : i32
    return %c0_i32, %c0_i32_0 : i32, i32
  }
  func.func @transform_4(%arg0: i32) -> (i32, i32) {
    %c0_i32 = arith.constant 0 : i32
    %c0_i32_0 = arith.constant 0 : i32
    %c0_i32_1 = arith.constant 0 : i32
    return %c0_i32, %c0_i32_0 : i32, i32
  }
  func.func @transform_5(%arg0: i32) -> (i32, i32) {
    %c0_i32 = arith.constant 0 : i32
    %c0_i32_0 = arith.constant 0 : i32
    %c0_i32_1 = arith.constant 0 : i32
    return %c0_i32, %c0_i32_0 : i32, i32
  }
  func.func @transform_6(%arg0: i32) -> (i32, i32) {
    %c0_i32 = arith.constant 0 : i32
    %c0_i32_0 = arith.constant 0 : i32
    return %arg0, %c0_i32 : i32, i32
  }
}

</mosaic_0001>

<llo_original>
// kernel: tpu_custom_call.1
$region0: #{tpu_custom_call.1}
  #allocation0 [shape = 'u32[]', space=smem, size = 0x4, offset = 0x4, fixed_abs, tag = 'smem constant byte address 0x4 - core index']
  #allocation1 [shape = 'u32[144,128]{1,0:T(1,128)}', space=vmem, size = 0x12000, scoped, tag = 'internal scratch']
  #allocation2 [shape = 'f32[1,128]{1,0:T(1,128)}', space=vmem, size = 0x200, scoped, tag = 'scratch operand']
  %s0 = inlined_call_operand.hbm [shape: f32[8,256], index: 0, kind: input, shape index: {}]
  %s1 = inlined_call_operand.vmem [shape: f32[1,128], index: 1, kind: input, shape index: {}]
  %s2 = inlined_call_operand.hbm [shape: f32[256,128], index: 2, kind: input, shape index: {}]
  %s3 = inlined_call_operand.hbm [shape: f32[128,128], index: 3, kind: input, shape index: {}]
  %s4 = inlined_call_operand.vmem [shape: f32[1,128], index: 4, kind: input, shape index: {}]
  %s5 = inlined_call_operand.vmem [shape: f32[1,128], index: 5, kind: input, shape index: {}]
  %s6 = inlined_call_operand.hbm [shape: f32[8,128], index: 6, kind: output, shape index: {}]
  %s7 = sld [smem:[#allocation0]]
  $region50: #{tpu_custom_call.1} parent=0
    _
  %s9 = ssub.s32 1, %s7
  %s10 = scalar_select 0, %s9, %s7
  $region1: #{tpu_custom_call.1} parent=0
    #allocation3 [shape = 'u8[8192]{0}', space=vmem, size = 0x2000, scoped, tag = 'input window, operand 0, single buffered']
    #allocation4 [shape = 's32[1]{0}', space=sflag, size = 0x4, scoped, tag = 'scoped memory for tpu_custom_call.1']
    #allocation5 [shape = 's32[1]{0}', space=sflag, size = 0x4, scoped, tag = 'scoped memory for tpu_custom_call.1']
    #allocation6 [shape = 'u8[131072]{0}', space=vmem, size = 0x20000, scoped, tag = 'input window, operand 2, single buffered']
    #allocation7 [shape = 's32[1]{0}', space=sflag, size = 0x4, scoped, tag = 'scoped memory for tpu_custom_call.1']
    #allocation8 [shape = 'u8[65536]{0}', space=vmem, size = 0x10000, scoped, tag = 'input window, operand 3, single buffered']
    #allocation9 [shape = 'u8[4096]{0}', space=vmem, size = 0x1000, scoped, tag = 'output window, operand 0, single buffered']
    %11 = vsyncpa [#allocation4], 0
    %12 = vsyncpa [#allocation7], 0
    %13 = vsyncpa [#allocation5], 0
    // Predicated region
    $region2: #{tpu_custom_call.1} parent=1 // pred_check
      _
    $region3: #{tpu_custom_call.1} parent=1 // pred_check_branch
      %15 = sbr.rel (0) target = $region5
    $region4: #{tpu_custom_call.1} parent=1 // pred_region
      %s17 = ssub.s32 256, 256
      %18 = vsyncadd [#allocation4], %s17
      %s20 = sshll.u32 [#allocation3], 4
      %s21 = int_to_ptr.vmem [resolvable:$true] %s20
      %23 = dma.hbm_to_vmem [thread:$0]  %s0, 256, %s21, [#allocation4]
    $region5: #{tpu_custom_call.1} parent=1 // pred_fallthru
      _
    // Predicated region
    $region6: #{tpu_custom_call.1} parent=1 // pred_check
      _
    $region7: #{tpu_custom_call.1} parent=1 // pred_check_branch
      %25 = sbr.rel (0) target = $region9
    $region8: #{tpu_custom_call.1} parent=1 // pred_region
      _
    $region9: #{tpu_custom_call.1} parent=1 // pred_fallthru
      _
    // Predicated region
    $region10: #{tpu_custom_call.1} parent=1 // pred_check
      _
    $region11: #{tpu_custom_call.1} parent=1 // pred_check_branch
      %27 = sbr.rel (0) target = $region13
    $region12: #{tpu_custom_call.1} parent=1 // pred_region
      %s29 = ssub.s32 4096, 4096
      %30 = vsyncadd [#allocation7], %s29
      %s31 = sshll.u32 [#allocation6], 4
      %s32 = int_to_ptr.vmem [resolvable:$true] %s31
      %37 = dma.hbm_to_vmem [thread:$0]  %s2, 4096, %s32, [#allocation7], 128, 128, 8
    $region13: #{tpu_custom_call.1} parent=1 // pred_fallthru
      _
    // Predicated region
    $region14: #{tpu_custom_call.1} parent=1 // pred_check
      _
    $region15: #{tpu_custom_call.1} parent=1 // pred_check_branch
      %39 = sbr.rel (0) target = $region17
    $region16: #{tpu_custom_call.1} parent=1 // pred_region
      %s41 = ssub.s32 2048, 2048
      %42 = vsyncadd [#allocation7], %s41
      %s43 = sshll.u32 [#allocation8], 4
      %s44 = int_to_ptr.vmem [resolvable:$true] %s43
      %49 = dma.hbm_to_vmem [thread:$0]  %s3, 2048, %s44, [#allocation7], 128, 128, 8
    $region17: #{tpu_custom_call.1} parent=1 // pred_fallthru
      _
    // Predicated region
    $region18: #{tpu_custom_call.1} parent=1 // pred_check
      _
    $region19: #{tpu_custom_call.1} parent=1 // pred_check_branch
      %51 = sbr.rel (0) target = $region21
    $region20: #{tpu_custom_call.1} parent=1 // pred_region
      _
    $region21: #{tpu_custom_call.1} parent=1 // pred_fallthru
      _
    // Predicated region
    $region22: #{tpu_custom_call.1} parent=1 // pred_check
      _
    $region23: #{tpu_custom_call.1} parent=1 // pred_check_branch
      %53 = sbr.rel (0) target = $region25
    $region24: #{tpu_custom_call.1} parent=1 // pred_region
      _
    $region25: #{tpu_custom_call.1} parent=1 // pred_fallthru
      _
    // Predicated region
    $region26: #{tpu_custom_call.1} parent=1 // pred_check
      _
    $region27: #{tpu_custom_call.1} parent=1 // pred_check_branch
      %55 = sbr.rel (0) target = $region29
    $region28: #{tpu_custom_call.1} parent=1 // pred_region
      %56 = dma.done [#allocation4], 256
    $region29: #{tpu_custom_call.1} parent=1 // pred_fallthru
      _
    // Predicated region
    $region30: #{tpu_custom_call.1} parent=1 // pred_check
      _
    $region31: #{tpu_custom_call.1} parent=1 // pred_check_branch
      %58 = sbr.rel (0) target = $region33
    $region32: #{tpu_custom_call.1} parent=1 // pred_region
      %59 = dma.done [#allocation7], 4096
    $region33: #{tpu_custom_call.1} parent=1 // pred_fallthru
      _
    // Predicated region
    $region34: #{tpu_custom_call.1} parent=1 // pred_check
      _
    $region35: #{tpu_custom_call.1} parent=1 // pred_check_branch
      %61 = sbr.rel (0) target = $region37
    $region36: #{tpu_custom_call.1} parent=1 // pred_region
      %62 = dma.done [#allocation7], 2048
    $region37: #{tpu_custom_call.1} parent=1 // pred_fallthru
      _
    %p63 = scmp.eq.s32.totalorder 0, 0
    // Predicated region
    $region38: #{tpu_custom_call.1} parent=1 // pred_check
      %p64 = pneg %p63
    $region39: #{tpu_custom_call.1} parent=1 // pred_check_branch
      %66 = sbr.rel (%p64) target = $region41
    $region40: #{tpu_custom_call.1} parent=1 // pred_region
      %v67 = vld [vmem:[%s1] sm:$0x1]
      %68 = vst [vmem:[#allocation2] sm:$0x1] %v67
    $region41: #{tpu_custom_call.1} parent=1 // pred_fallthru
      _
    %v69 = vld [vmem:[#allocation3] sm:$0xff]
    %v70 = vld [vmem:[#allocation3 + $0x8] sm:$0xff]
    %v71 = vld [vmem:[#allocation6] sm:$0xff]
    %v72 = vld [vmem:[#allocation6 + $0x8] sm:$0xff]
    %v73 = vld [vmem:[#allocation6 + $0x10] sm:$0xff]
    %v74 = vld [vmem:[#allocation6 + $0x18] sm:$0xff]
    %v75 = vld [vmem:[#allocation6 + $0x20] sm:$0xff]
    %v76 = vld [vmem:[#allocation6 + $0x28] sm:$0xff]
    %v77 = vld [vmem:[#allocation6 + $0x30] sm:$0xff]
    %v78 = vld [vmem:[#allocation6 + $0x38] sm:$0xff]
    %v79 = vld [vmem:[#allocation6 + $0x40] sm:$0xff]
    %v80 = vld [vmem:[#allocation6 + $0x48] sm:$0xff]
    %v81 = vld [vmem:[#allocation6 + $0x50] sm:$0xff]
    %v82 = vld [vmem:[#allocation6 + $0x58] sm:$0xff]
    %v83 = vld [vmem:[#allocation6 + $0x60] sm:$0xff]
    %v84 = vld [vmem:[#allocation6 + $0x68] sm:$0xff]
    %v85 = vld [vmem:[#allocation6 + $0x70] sm:$0xff]
    %v86 = vld [vmem:[#allocation6 + $0x78] sm:$0xff]
    %v87 = vld [vmem:[#allocation6 + $0x80] sm:$0xff]
    %v88 = vld [vmem:[#allocation6 + $0x88] sm:$0xff]
    %v89 = vld [vmem:[#allocation6 + $0x90] sm:$0xff]
    %v90 = vld [vmem:[#allocation6 + $0x98] sm:$0xff]
    %v91 = vld [vmem:[#allocation6 + $0xa0] sm:$0xff]
    %v92 = vld [vmem:[#allocation6 + $0xa8] sm:$0xff]
    %v93 = vld [vmem:[#allocation6 + $0xb0] sm:$0xff]
    %v94 = vld [vmem:[#allocation6 + $0xb8] sm:$0xff]
    %v95 = vld [vmem:[#allocation6 + $0xc0] sm:$0xff]
    %v96 = vld [vmem:[#allocation6 + $0xc8] sm:$0xff]
    %v97 = vld [vmem:[#allocation6 + $0xd0] sm:$0xff]
    %v98 = vld [vmem:[#allocation6 + $0xd8] sm:$0xff]
    %v99 = vld [vmem:[#allocation6 + $0xe0] sm:$0xff]
    %v100 = vld [vmem:[#allocation6 + $0xe8] sm:$0xff]
    %v101 = vld [vmem:[#allocation6 + $0xf0] sm:$0xff]
    %v102 = vld [vmem:[#allocation6 + $0xf8] sm:$0xff]
    %v103 = vld [vmem:[%s4] sm:$0x1]
    %v105 = vlaneseq
    %v106 = vshrl.u32 %v105, 7
    %v107 = vsub.s32 0, %v106
    %v108 = vrot.slane %v103, %v107
    %110 = vmatprep.subr.mxu0 0.0
    %111 = vmatpush1.msra.mxu0 %v86
    %112 = vmatprep.subr.mxu0 0.0
    %113 = vmatpush1.msra.mxu0 %v85
    %114 = vmatprep.subr.mxu0 0.0
    %115 = vmatpush1.msra.mxu0 %v84
    %116 = vmatprep.subr.mxu0 0.0
    %117 = vmatpush1.msra.mxu0 %v83
    %118 = vmatprep.subr.mxu0 0.0
    %119 = vmatpush1.msra.mxu0 %v82
    %120 = vmatprep.subr.mxu0 0.0
    %121 = vmatpush1.msra.mxu0 %v81
    %122 = vmatprep.subr.mxu0 0.0
    %123 = vmatpush1.msra.mxu0 %v80
    %124 = vmatprep.subr.mxu0 0.0
    %125 = vmatpush1.msra.mxu0 %v79
    %126 = vmatprep.subr.mxu0 0.0
    %127 = vmatpush1.msra.mxu0 %v78
    %128 = vmatprep.subr.mxu0 0.0
    %129 = vmatpush1.msra.mxu0 %v77
    %130 = vmatprep.subr.mxu0 0.0
    %131 = vmatpush1.msra.mxu0 %v76
    %132 = vmatprep.subr.mxu0 0.0
    %133 = vmatpush1.msra.mxu0 %v75
    %134 = vmatprep.subr.mxu0 0.0
    %135 = vmatpush1.msra.mxu0 %v74
    %136 = vmatprep.subr.mxu0 0.0
    %137 = vmatpush1.msra.mxu0 %v73
    %138 = vmatprep.subr.mxu0 0.0
    %139 = vmatpush1.msra.mxu0 %v72
    %140 = vmatprep.subr.mxu0 0.0
    %141 = vmatpush1.msra.mxu0 %v71
    %142 = vmatprep.subr.mxu0 0.0
    %143 = vmatpush2.msra.mxu0 %v102
    %144 = vmatprep.subr.mxu0 0.0
    %145 = vmatpush2.msra.mxu0 %v101
    %146 = vmatprep.subr.mxu0 0.0
    %147 = vmatpush2.msra.mxu0 %v100
    %148 = vmatprep.subr.mxu0 0.0
    %149 = vmatpush2.msra.mxu0 %v99
    %150 = vmatprep.subr.mxu0 0.0
    %151 = vmatpush2.msra.mxu0 %v98
    %152 = vmatprep.subr.mxu0 0.0
    %153 = vmatpush2.msra.mxu0 %v97
    %154 = vmatprep.subr.mxu0 0.0
    %155 = vmatpush2.msra.mxu0 %v96
    %156 = vmatprep.subr.mxu0 0.0
    %157 = vmatpush2.msra.mxu0 %v95
    %158 = vmatprep.subr.mxu0 0.0
    %159 = vmatpush2.msra.mxu0 %v94
    %160 = vmatprep.subr.mxu0 0.0
    %161 = vmatpush2.msra.mxu0 %v93
    %162 = vmatprep.subr.mxu0 0.0
    %163 = vmatpush2.msra.mxu0 %v92
    %164 = vmatprep.subr.mxu0 0.0
    %165 = vmatpush2.msra.mxu0 %v91
    %166 = vmatprep.subr.mxu0 0.0
    %167 = vmatpush2.msra.mxu0 %v90
    %168 = vmatprep.subr.mxu0 0.0
    %169 = vmatpush2.msra.mxu0 %v89
    %170 = vmatprep.subr.mxu0 0.0
    %171 = vmatpush2.msra.mxu0 %v88
    %172 = vmatprep.subr.mxu0 0.0
    %173 = vmatpush2.msra.mxu0 %v87
    %174 = vmatprep.mubr.f32.mxu0 %v70
    %175 = vmatmul.mubr.f32.gmra.mxu0 %v69
    %v176 = vpop.f32.mrf.mxu0
    %v177 = vadd.f32 %v108, %v176
    %v178 = vpop.f32.mrf.mxu0
    %179 = vdwg.mxu0
    %v180 = vld [vmem:[%s5] sm:$0x1]
    %v182 = vlaneseq
    %v183 = vshrl.u32 %v182, 7
    %v184 = vsub.s32 0, %v183
    %v185 = vrot.slane %v180, %v184
    %v187 = vadd.f32 %v177, %v185
    %188 = vst [vmem:[#allocation9] sm:$0xff] %v187
    %v189 = vld [vmem:[#allocation8] sm:$0xff]
    %v190 = vld [vmem:[#allocation8 + $0x8] sm:$0xff]
    %v191 = vld [vmem:[#allocation8 + $0x10] sm:$0xff]
    %v192 = vld [vmem:[#allocation8 + $0x18] sm:$0xff]
    %v193 = vld [vmem:[#allocation8 + $0x20] sm:$0xff]
    %v194 = vld [vmem:[#allocation8 + $0x28] sm:$0xff]
    %v195 = vld [vmem:[#allocation8 + $0x30] sm:$0xff]
    %v196 = vld [vmem:[#allocation8 + $0x38] sm:$0xff]
    %v197 = vld [vmem:[#allocation8 + $0x40] sm:$0xff]
    %v198 = vld [vmem:[#allocation8 + $0x48] sm:$0xff]
    %v199 = vld [vmem:[#allocation8 + $0x50] sm:$0xff]
    %v200 = vld [vmem:[#allocation8 + $0x58] sm:$0xff]
    %v201 = vld [vmem:[#allocation8 + $0x60] sm:$0xff]
    %v202 = vld [vmem:[#allocation8 + $0x68] sm:$0xff]
    %v203 = vld [vmem:[#allocation8 + $0x70] sm:$0xff]
    %v204 = vld [vmem:[#allocation8 + $0x78] sm:$0xff]
    %v205 = vld [vmem:[#allocation2] sm:$0x1]
    %v206 = vld [vmem:[#allocation9] sm:$0xff]
    %207 = vmatprep.subr.mxu0 0.0
    %208 = vmatpush1.msra.mxu0 %v204
    %209 = vmatprep.subr.mxu0 0.0
    %210 = vmatpush1.msra.mxu0 %v203
    %211 = vmatprep.subr.mxu0 0.0
    %212 = vmatpush1.msra.mxu0 %v202
    %213 = vmatprep.subr.mxu0 0.0
    %214 = vmatpush1.msra.mxu0 %v201
    %215 = vmatprep.subr.mxu0 0.0
    %216 = vmatpush1.msra.mxu0 %v200
    %217 = vmatprep.subr.mxu0 0.0
    %218 = vmatpush1.msra.mxu0 %v199
    %219 = vmatprep.subr.mxu0 0.0
    %220 = vmatpush1.msra.mxu0 %v198
    %221 = vmatprep.subr.mxu0 0.0
    %222 = vmatpush1.msra.mxu0 %v197
    %223 = vmatprep.subr.mxu0 0.0
    %224 = vmatpush1.msra.mxu0 %v196
    %225 = vmatprep.subr.mxu0 0.0
    %226 = vmatpush1.msra.mxu0 %v195
    %227 = vmatprep.subr.mxu0 0.0
    %228 = vmatpush1.msra.mxu0 %v194
    %229 = vmatprep.subr.mxu0 0.0
    %230 = vmatpush1.msra.mxu0 %v193
    %231 = vmatprep.subr.mxu0 0.0
    %232 = vmatpush1.msra.mxu0 %v192
    %233 = vmatprep.subr.mxu0 0.0
    %234 = vmatpush1.msra.mxu0 %v191
    %235 = vmatprep.subr.mxu0 0.0
    %236 = vmatpush1.msra.mxu0 %v190
    %237 = vmatprep.subr.mxu0 0.0
    %238 = vmatpush1.msra.mxu0 %v189
    %239 = vmatprep.subr.mxu0 0.0
    %240 = vmatpush2.msra.mxu0 0.0
    %241 = vmatprep.subr.mxu0 0.0
    %242 = vmatpush2.msra.mxu0 0.0
    %243 = vmatprep.subr.mxu0 0.0
    %244 = vmatpush2.msra.mxu0 0.0
    %245 = vmatprep.subr.mxu0 0.0
    %246 = vmatpush2.msra.mxu0 0.0
    %247 = vmatprep.subr.mxu0 0.0
    %248 = vmatpush2.msra.mxu0 0.0
    %249 = vmatprep.subr.mxu0 0.0
    %250 = vmatpush2.msra.mxu0 0.0
    %251 = vmatprep.subr.mxu0 0.0
    %252 = vmatpush2.msra.mxu0 0.0
    %253 = vmatprep.subr.mxu0 0.0
    %254 = vmatpush2.msra.mxu0 0.0
    %255 = vmatprep.subr.mxu0 0.0
    %256 = vmatpush2.msra.mxu0 0.0
    %257 = vmatprep.subr.mxu0 0.0
    %258 = vmatpush2.msra.mxu0 0.0
    %259 = vmatprep.subr.mxu0 0.0
    %260 = vmatpush2.msra.mxu0 0.0
    %261 = vmatprep.subr.mxu0 0.0
    %262 = vmatpush2.msra.mxu0 0.0
    %263 = vmatprep.subr.mxu0 0.0
    %264 = vmatpush2.msra.mxu0 0.0
    %265 = vmatprep.subr.mxu0 0.0
    %266 = vmatpush2.msra.mxu0 0.0
    %267 = vmatprep.subr.mxu0 0.0
    %268 = vmatpush2.msra.mxu0 0.0
    %269 = vmatprep.subr.mxu0 0.0
    %270 = vmatpush2.msra.mxu0 0.0
    %271 = vmatprep.mubr.f32.mxu0 0.0
    %272 = vmatmul.mubr.f32.gmra.mxu0 %v205
    %v273 = vpop.f32.mrf.mxu0
    %v274 = vadd.f32 0.0, %v273
    %v275 = vpop.f32.mrf.mxu0
    %276 = vdwg.mxu0
    %v277 = vadd.f32 %v206, %v274
    %v278 = vtanh.pop %v277
    %279 = vmatprep.subr.mxu0 0.0
    %280 = vmatpush1.msra.mxu0 %v204
    %281 = vmatprep.subr.mxu0 0.0
    %282 = vmatpush1.msra.mxu0 %v203
    %283 = vmatprep.subr.mxu0 0.0
    %284 = vmatpush1.msra.mxu0 %v202
    %285 = vmatprep.subr.mxu0 0.0
    %286 = vmatpush1.msra.mxu0 %v201
    %287 = vmatprep.subr.mxu0 0.0
    %288 = vmatpush1.msra.mxu0 %v200
    %289 = vmatprep.subr.mxu0 0.0
    %290 = vmatpush1.msra.mxu0 %v199
    %291 = vmatprep.subr.mxu0 0.0
    %292 = vmatpush1.msra.mxu0 %v198
    %293 = vmatprep.subr.mxu0 0.0
    %294 = vmatpush1.msra.mxu0 %v197
    %295 = vmatprep.subr.mxu0 0.0
    %296 = vmatpush1.msra.mxu0 %v196
    %297 = vmatprep.subr.mxu0 0.0
    %298 = vmatpush1.msra.mxu0 %v195
    %299 = vmatprep.subr.mxu0 0.0
    %300 = vmatpush1.msra.mxu0 %v194
    %301 = vmatprep.subr.mxu0 0.0
    %302 = vmatpush1.msra.mxu0 %v193
    %303 = vmatprep.subr.mxu0 0.0
    %304 = vmatpush1.msra.mxu0 %v192
    %305 = vmatprep.subr.mxu0 0.0
    %306 = vmatpush1.msra.mxu0 %v191
    %307 = vmatprep.subr.mxu0 0.0
    %308 = vmatpush1.msra.mxu0 %v190
    %309 = vmatprep.subr.mxu0 0.0
    %310 = vmatpush1.msra.mxu0 %v189
    %311 = vmatprep.subr.mxu0 0.0
    %312 = vmatpush2.msra.mxu0 0.0
    %313 = vmatprep.subr.mxu0 0.0
    %314 = vmatpush2.msra.mxu0 0.0
    %315 = vmatprep.subr.mxu0 0.0
    %316 = vmatpush2.msra.mxu0 0.0
    %317 = vmatprep.subr.mxu0 0.0
    %318 = vmatpush2.msra.mxu0 0.0
    %319 = vmatprep.subr.mxu0 0.0
    %320 = vmatpush2.msra.mxu0 0.0
    %321 = vmatprep.subr.mxu0 0.0
    %322 = vmatpush2.msra.mxu0 0.0
    %323 = vmatprep.subr.mxu0 0.0
    %324 = vmatpush2.msra.mxu0 0.0
    %325 = vmatprep.subr.mxu0 0.0
    %326 = vmatpush2.msra.mxu0 0.0
    %327 = vmatprep.subr.mxu0 0.0
    %328 = vmatpush2.msra.mxu0 0.0
    %329 = vmatprep.subr.mxu0 0.0
    %330 = vmatpush2.msra.mxu0 0.0
    %331 = vmatprep.subr.mxu0 0.0
    %332 = vmatpush2.msra.mxu0 0.0
    %333 = vmatprep.subr.mxu0 0.0
    %334 = vmatpush2.msra.mxu0 0.0
    %335 = vmatprep.subr.mxu0 0.0
    %336 = vmatpush2.msra.mxu0 0.0
    %337 = vmatprep.subr.mxu0 0.0
    %338 = vmatpush2.msra.mxu0 0.0
    %339 = vmatprep.subr.mxu0 0.0
    %340 = vmatpush2.msra.mxu0 0.0
    %341 = vmatprep.subr.mxu0 0.0
    %342 = vmatpush2.msra.mxu0 0.0
    %343 = vmatprep.mubr.f32.mxu0 0.0
    %344 = vmatmul.mubr.f32.gmra.mxu0 %v278
    %v345 = vpop.f32.mrf.mxu0
    %v346 = vadd.f32 0.0, %v345
    %v347 = vpop.f32.mrf.mxu0
    %348 = vdwg.mxu0
    %v350 = vrot.slane %v346, 7
    %v352 = vadd.f32 %v206, %v350
    %v353 = vtanh.pop %v352
    %v355 = vrot.slane %v353, 1
    %357 = vmatprep.subr.mxu0 0.0
    %358 = vmatpush1.msra.mxu0 %v204
    %359 = vmatprep.subr.mxu0 0.0
    %360 = vmatpush1.msra.mxu0 %v203
    %361 = vmatprep.subr.mxu0 0.0
    %362 = vmatpush1.msra.mxu0 %v202
    %363 = vmatprep.subr.mxu0 0.0
    %364 = vmatpush1.msra.mxu0 %v201
    %365 = vmatprep.subr.mxu0 0.0
    %366 = vmatpush1.msra.mxu0 %v200
    %367 = vmatprep.subr.mxu0 0.0
    %368 = vmatpush1.msra.mxu0 %v199
    %369 = vmatprep.subr.mxu0 0.0
    %370 = vmatpush1.msra.mxu0 %v198
    %371 = vmatprep.subr.mxu0 0.0
    %372 = vmatpush1.msra.mxu0 %v197
    %373 = vmatprep.subr.mxu0 0.0
    %374 = vmatpush1.msra.mxu0 %v196
    %375 = vmatprep.subr.mxu0 0.0
    %376 = vmatpush1.msra.mxu0 %v195
    %377 = vmatprep.subr.mxu0 0.0
    %378 = vmatpush1.msra.mxu0 %v194
    %379 = vmatprep.subr.mxu0 0.0
    %380 = vmatpush1.msra.mxu0 %v193
    %381 = vmatprep.subr.mxu0 0.0
    %382 = vmatpush1.msra.mxu0 %v192
    %383 = vmatprep.subr.mxu0 0.0
    %384 = vmatpush1.msra.mxu0 %v191
    %385 = vmatprep.subr.mxu0 0.0
    %386 = vmatpush1.msra.mxu0 %v190
    %387 = vmatprep.subr.mxu0 0.0
    %388 = vmatpush1.msra.mxu0 %v189
    %389 = vmatprep.subr.mxu0 0.0
    %390 = vmatpush2.msra.mxu0 0.0
    %391 = vmatprep.subr.mxu0 0.0
    %392 = vmatpush2.msra.mxu0 0.0
    %393 = vmatprep.subr.mxu0 0.0
    %394 = vmatpush2.msra.mxu0 0.0
    %395 = vmatprep.subr.mxu0 0.0
    %396 = vmatpush2.msra.mxu0 0.0
    %397 = vmatprep.subr.mxu0 0.0
    %398 = vmatpush2.msra.mxu0 0.0
    %399 = vmatprep.subr.mxu0 0.0
    %400 = vmatpush2.msra.mxu0 0.0
    %401 = vmatprep.subr.mxu0 0.0
    %402 = vmatpush2.msra.mxu0 0.0
    %403 = vmatprep.subr.mxu0 0.0
    %404 = vmatpush2.msra.mxu0 0.0
    %405 = vmatprep.subr.mxu0 0.0
    %406 = vmatpush2.msra.mxu0 0.0
    %407 = vmatprep.subr.mxu0 0.0
    %408 = vmatpush2.msra.mxu0 0.0
    %409 = vmatprep.subr.mxu0 0.0
    %410 = vmatpush2.msra.mxu0 0.0
    %411 = vmatprep.subr.mxu0 0.0
    %412 = vmatpush2.msra.mxu0 0.0
    %413 = vmatprep.subr.mxu0 0.0
    %414 = vmatpush2.msra.mxu0 0.0
    %415 = vmatprep.subr.mxu0 0.0
    %416 = vmatpush2.msra.mxu0 0.0
    %417 = vmatprep.subr.mxu0 0.0
    %418 = vmatpush2.msra.mxu0 0.0
    %419 = vmatprep.subr.mxu0 0.0
    %420 = vmatpush2.msra.mxu0 0.0
    %421 = vmatprep.mubr.f32.mxu0 0.0
    %422 = vmatmul.mubr.f32.gmra.mxu0 %v355
    %v423 = vpop.f32.mrf.mxu0
    %v424 = vadd.f32 0.0, %v423
    %v425 = vpop.f32.mrf.mxu0
    %426 = vdwg.mxu0
    %v428 = vrot.slane %v424, 6
    %v430 = vadd.f32 %v206, %v428
    %v431 = vtanh.pop %v430
    %v433 = vrot.slane %v431, 2
    %435 = vmatprep.subr.mxu0 0.0
    %436 = vmatpush1.msra.mxu0 %v204
    %437 = vmatprep.subr.mxu0 0.0
    %438 = vmatpush1.msra.mxu0 %v203
    %439 = vmatprep.subr.mxu0 0.0
    %440 = vmatpush1.msra.mxu0 %v202
    %441 = vmatprep.subr.mxu0 0.0
    %442 = vmatpush1.msra.mxu0 %v201
    %443 = vmatprep.subr.mxu0 0.0
    %444 = vmatpush1.msra.mxu0 %v200
    %445 = vmatprep.subr.mxu0 0.0
    %446 = vmatpush1.msra.mxu0 %v199
    %447 = vmatprep.subr.mxu0 0.0
    %448 = vmatpush1.msra.mxu0 %v198
    %449 = vmatprep.subr.mxu0 0.0
    %450 = vmatpush1.msra.mxu0 %v197
    %451 = vmatprep.subr.mxu0 0.0
    %452 = vmatpush1.msra.mxu0 %v196
    %453 = vmatprep.subr.mxu0 0.0
    %454 = vmatpush1.msra.mxu0 %v195
    %455 = vmatprep.subr.mxu0 0.0
    %456 = vmatpush1.msra.mxu0 %v194
    %457 = vmatprep.subr.mxu0 0.0
    %458 = vmatpush1.msra.mxu0 %v193
    %459 = vmatprep.subr.mxu0 0.0
    %460 = vmatpush1.msra.mxu0 %v192
    %461 = vmatprep.subr.mxu0 0.0
    %462 = vmatpush1.msra.mxu0 %v191
    %463 = vmatprep.subr.mxu0 0.0
    %464 = vmatpush1.msra.mxu0 %v190
    %465 = vmatprep.subr.mxu0 0.0
    %466 = vmatpush1.msra.mxu0 %v189
    %467 = vmatprep.subr.mxu0 0.0
    %468 = vmatpush2.msra.mxu0 0.0
    %469 = vmatprep.subr.mxu0 0.0
    %470 = vmatpush2.msra.mxu0 0.0
    %471 = vmatprep.subr.mxu0 0.0
    %472 = vmatpush2.msra.mxu0 0.0
    %473 = vmatprep.subr.mxu0 0.0
    %474 = vmatpush2.msra.mxu0 0.0
    %475 = vmatprep.subr.mxu0 0.0
    %476 = vmatpush2.msra.mxu0 0.0
    %477 = vmatprep.subr.mxu0 0.0
    %478 = vmatpush2.msra.mxu0 0.0
    %479 = vmatprep.subr.mxu0 0.0
    %480 = vmatpush2.msra.mxu0 0.0
    %481 = vmatprep.subr.mxu0 0.0
    %482 = vmatpush2.msra.mxu0 0.0
    %483 = vmatprep.subr.mxu0 0.0
    %484 = vmatpush2.msra.mxu0 0.0
    %485 = vmatprep.subr.mxu0 0.0
    %486 = vmatpush2.msra.mxu0 0.0
    %487 = vmatprep.subr.mxu0 0.0
    %488 = vmatpush2.msra.mxu0 0.0
    %489 = vmatprep.subr.mxu0 0.0
    %490 = vmatpush2.msra.mxu0 0.0
    %491 = vmatprep.subr.mxu0 0.0
    %492 = vmatpush2.msra.mxu0 0.0
    %493 = vmatprep.subr.mxu0 0.0
    %494 = vmatpush2.msra.mxu0 0.0
    %495 = vmatprep.subr.mxu0 0.0
    %496 = vmatpush2.msra.mxu0 0.0
    %497 = vmatprep.subr.mxu0 0.0
    %498 = vmatpush2.msra.mxu0 0.0
    %499 = vmatprep.mubr.f32.mxu0 0.0
    %500 = vmatmul.mubr.f32.gmra.mxu0 %v433
    %v501 = vpop.f32.mrf.mxu0
    %v502 = vadd.f32 0.0, %v501
    %v503 = vpop.f32.mrf.mxu0
    %504 = vdwg.mxu0
    %v506 = vrot.slane %v502, 5
    %v508 = vadd.f32 %v206, %v506
    %v509 = vtanh.pop %v508
    %v511 = vrot.slane %v509, 3
    %513 = vmatprep.subr.mxu0 0.0
    %514 = vmatpush1.msra.mxu0 %v204
    %515 = vmatprep.subr.mxu0 0.0
    %516 = vmatpush1.msra.mxu0 %v203
    %517 = vmatprep.subr.mxu0 0.0
    %518 = vmatpush1.msra.mxu0 %v202
    %519 = vmatprep.subr.mxu0 0.0
    %520 = vmatpush1.msra.mxu0 %v201
    %521 = vmatprep.subr.mxu0 0.0
    %522 = vmatpush1.msra.mxu0 %v200
    %523 = vmatprep.subr.mxu0 0.0
    %524 = vmatpush1.msra.mxu0 %v199
    %525 = vmatprep.subr.mxu0 0.0
    %526 = vmatpush1.msra.mxu0 %v198
    %527 = vmatprep.subr.mxu0 0.0
    %528 = vmatpush1.msra.mxu0 %v197
    %529 = vmatprep.subr.mxu0 0.0
    %530 = vmatpush1.msra.mxu0 %v196
    %531 = vmatprep.subr.mxu0 0.0
    %532 = vmatpush1.msra.mxu0 %v195
    %533 = vmatprep.subr.mxu0 0.0
    %534 = vmatpush1.msra.mxu0 %v194
    %535 = vmatprep.subr.mxu0 0.0
    %536 = vmatpush1.msra.mxu0 %v193
    %537 = vmatprep.subr.mxu0 0.0
    %538 = vmatpush1.msra.mxu0 %v192
    %539 = vmatprep.subr.mxu0 0.0
    %540 = vmatpush1.msra.mxu0 %v191
    %541 = vmatprep.subr.mxu0 0.0
    %542 = vmatpush1.msra.mxu0 %v190
    %543 = vmatprep.subr.mxu0 0.0
    %544 = vmatpush1.msra.mxu0 %v189
    %545 = vmatprep.subr.mxu0 0.0
    %546 = vmatpush2.msra.mxu0 0.0
    %547 = vmatprep.subr.mxu0 0.0
    %548 = vmatpush2.msra.mxu0 0.0
    %549 = vmatprep.subr.mxu0 0.0
    %550 = vmatpush2.msra.mxu0 0.0
    %551 = vmatprep.subr.mxu0 0.0
    %552 = vmatpush2.msra.mxu0 0.0
    %553 = vmatprep.subr.mxu0 0.0
    %554 = vmatpush2.msra.mxu0 0.0
    %555 = vmatprep.subr.mxu0 0.0
    %556 = vmatpush2.msra.mxu0 0.0
    %557 = vmatprep.subr.mxu0 0.0
    %558 = vmatpush2.msra.mxu0 0.0
    %559 = vmatprep.subr.mxu0 0.0
    %560 = vmatpush2.msra.mxu0 0.0
    %561 = vmatprep.subr.mxu0 0.0
    %562 = vmatpush2.msra.mxu0 0.0
    %563 = vmatprep.subr.mxu0 0.0
    %564 = vmatpush2.msra.mxu0 0.0
    %565 = vmatprep.subr.mxu0 0.0
    %566 = vmatpush2.msra.mxu0 0.0
    %567 = vmatprep.subr.mxu0 0.0
    %568 = vmatpush2.msra.mxu0 0.0
    %569 = vmatprep.subr.mxu0 0.0
    %570 = vmatpush2.msra.mxu0 0.0
    %571 = vmatprep.subr.mxu0 0.0
    %572 = vmatpush2.msra.mxu0 0.0
    %573 = vmatprep.subr.mxu0 0.0
    %574 = vmatpush2.msra.mxu0 0.0
    %575 = vmatprep.subr.mxu0 0.0
    %576 = vmatpush2.msra.mxu0 0.0
    %577 = vmatprep.mubr.f32.mxu0 0.0
    %578 = vmatmul.mubr.f32.gmra.mxu0 %v511
    %v579 = vpop.f32.mrf.mxu0
    %v580 = vadd.f32 0.0, %v579
    %v581 = vpop.f32.mrf.mxu0
    %582 = vdwg.mxu0
    %v584 = vrot.slane %v580, 4
    %v586 = vadd.f32 %v206, %v584
    %v587 = vtanh.pop %v586
    %v589 = vrot.slane %v587, 4
    %591 = vmatprep.subr.mxu0 0.0
    %592 = vmatpush1.msra.mxu0 %v204
    %593 = vmatprep.subr.mxu0 0.0
    %594 = vmatpush1.msra.mxu0 %v203
    %595 = vmatprep.subr.mxu0 0.0
    %596 = vmatpush1.msra.mxu0 %v202
    %597 = vmatprep.subr.mxu0 0.0
    %598 = vmatpush1.msra.mxu0 %v201
    %599 = vmatprep.subr.mxu0 0.0
    %600 = vmatpush1.msra.mxu0 %v200
    %601 = vmatprep.subr.mxu0 0.0
    %602 = vmatpush1.msra.mxu0 %v199
    %603 = vmatprep.subr.mxu0 0.0
    %604 = vmatpush1.msra.mxu0 %v198
    %605 = vmatprep.subr.mxu0 0.0
    %606 = vmatpush1.msra.mxu0 %v197
    %607 = vmatprep.subr.mxu0 0.0
    %608 = vmatpush1.msra.mxu0 %v196
    %609 = vmatprep.subr.mxu0 0.0
    %610 = vmatpush1.msra.mxu0 %v195
    %611 = vmatprep.subr.mxu0 0.0
    %612 = vmatpush1.msra.mxu0 %v194
    %613 = vmatprep.subr.mxu0 0.0
    %614 = vmatpush1.msra.mxu0 %v193
    %615 = vmatprep.subr.mxu0 0.0
    %616 = vmatpush1.msra.mxu0 %v192
    %617 = vmatprep.subr.mxu0 0.0
    %618 = vmatpush1.msra.mxu0 %v191
    %619 = vmatprep.subr.mxu0 0.0
    %620 = vmatpush1.msra.mxu0 %v190
    %621 = vmatprep.subr.mxu0 0.0
    %622 = vmatpush1.msra.mxu0 %v189
    %623 = vmatprep.subr.mxu0 0.0
    %624 = vmatpush2.msra.mxu0 0.0
    %625 = vmatprep.subr.mxu0 0.0
    %626 = vmatpush2.msra.mxu0 0.0
    %627 = vmatprep.subr.mxu0 0.0
    %628 = vmatpush2.msra.mxu0 0.0
    %629 = vmatprep.subr.mxu0 0.0
    %630 = vmatpush2.msra.mxu0 0.0
    %631 = vmatprep.subr.mxu0 0.0
    %632 = vmatpush2.msra.mxu0 0.0
    %633 = vmatprep.subr.mxu0 0.0
    %634 = vmatpush2.msra.mxu0 0.0
    %635 = vmatprep.subr.mxu0 0.0
    %636 = vmatpush2.msra.mxu0 0.0
    %637 = vmatprep.subr.mxu0 0.0
    %638 = vmatpush2.msra.mxu0 0.0
    %639 = vmatprep.subr.mxu0 0.0
    %640 = vmatpush2.msra.mxu0 0.0
    %641 = vmatprep.subr.mxu0 0.0
    %642 = vmatpush2.msra.mxu0 0.0
    %643 = vmatprep.subr.mxu0 0.0
    %644 = vmatpush2.msra.mxu0 0.0
    %645 = vmatprep.subr.mxu0 0.0
    %646 = vmatpush2.msra.mxu0 0.0
    %647 = vmatprep.subr.mxu0 0.0
    %648 = vmatpush2.msra.mxu0 0.0
    %649 = vmatprep.subr.mxu0 0.0
    %650 = vmatpush2.msra.mxu0 0.0
    %651 = vmatprep.subr.mxu0 0.0
    %652 = vmatpush2.msra.mxu0 0.0
    %653 = vmatprep.subr.mxu0 0.0
    %654 = vmatpush2.msra.mxu0 0.0
    %655 = vmatprep.mubr.f32.mxu0 0.0
    %656 = vmatmul.mubr.f32.gmra.mxu0 %v589
    %v657 = vpop.f32.mrf.mxu0
    %v658 = vadd.f32 0.0, %v657
    %v659 = vpop.f32.mrf.mxu0
    %660 = vdwg.mxu0
    %v662 = vrot.slane %v658, 3
    %v664 = vadd.f32 %v206, %v662
    %v665 = vtanh.pop %v664
    %v667 = vrot.slane %v665, 5
    %669 = vmatprep.subr.mxu0 0.0
    %670 = vmatpush1.msra.mxu0 %v204
    %671 = vmatprep.subr.mxu0 0.0
    %672 = vmatpush1.msra.mxu0 %v203
    %673 = vmatprep.subr.mxu0 0.0
    %674 = vmatpush1.msra.mxu0 %v202
    %675 = vmatprep.subr.mxu0 0.0
    %676 = vmatpush1.msra.mxu0 %v201
    %677 = vmatprep.subr.mxu0 0.0
    %678 = vmatpush1.msra.mxu0 %v200
    %679 = vmatprep.subr.mxu0 0.0
    %680 = vmatpush1.msra.mxu0 %v199
    %681 = vmatprep.subr.mxu0 0.0
    %682 = vmatpush1.msra.mxu0 %v198
    %683 = vmatprep.subr.mxu0 0.0
    %684 = vmatpush1.msra.mxu0 %v197
    %685 = vmatprep.subr.mxu0 0.0
    %686 = vmatpush1.msra.mxu0 %v196
    %687 = vmatprep.subr.mxu0 0.0
    %688 = vmatpush1.msra.mxu0 %v195
    %689 = vmatprep.subr.mxu0 0.0
    %690 = vmatpush1.msra.mxu0 %v194
    %691 = vmatprep.subr.mxu0 0.0
    %692 = vmatpush1.msra.mxu0 %v193
    %693 = vmatprep.subr.mxu0 0.0
    %694 = vmatpush1.msra.mxu0 %v192
    %695 = vmatprep.subr.mxu0 0.0
    %696 = vmatpush1.msra.mxu0 %v191
    %697 = vmatprep.subr.mxu0 0.0
    %698 = vmatpush1.msra.mxu0 %v190
    %699 = vmatprep.subr.mxu0 0.0
    %700 = vmatpush1.msra.mxu0 %v189
    %701 = vmatprep.subr.mxu0 0.0
    %702 = vmatpush2.msra.mxu0 0.0
    %703 = vmatprep.subr.mxu0 0.0
    %704 = vmatpush2.msra.mxu0 0.0
    %705 = vmatprep.subr.mxu0 0.0
    %706 = vmatpush2.msra.mxu0 0.0
    %707 = vmatprep.subr.mxu0 0.0
    %708 = vmatpush2.msra.mxu0 0.0
    %709 = vmatprep.subr.mxu0 0.0
    %710 = vmatpush2.msra.mxu0 0.0
    %711 = vmatprep.subr.mxu0 0.0
    %712 = vmatpush2.msra.mxu0 0.0
    %713 = vmatprep.subr.mxu0 0.0
    %714 = vmatpush2.msra.mxu0 0.0
    %715 = vmatprep.subr.mxu0 0.0
    %716 = vmatpush2.msra.mxu0 0.0
    %717 = vmatprep.subr.mxu0 0.0
    %718 = vmatpush2.msra.mxu0 0.0
    %719 = vmatprep.subr.mxu0 0.0
    %720 = vmatpush2.msra.mxu0 0.0
    %721 = vmatprep.subr.mxu0 0.0
    %722 = vmatpush2.msra.mxu0 0.0
    %723 = vmatprep.subr.mxu0 0.0
    %724 = vmatpush2.msra.mxu0 0.0
    %725 = vmatprep.subr.mxu0 0.0
    %726 = vmatpush2.msra.mxu0 0.0
    %727 = vmatprep.subr.mxu0 0.0
    %728 = vmatpush2.msra.mxu0 0.0
    %729 = vmatprep.subr.mxu0 0.0
    %730 = vmatpush2.msra.mxu0 0.0
    %731 = vmatprep.subr.mxu0 0.0
    %732 = vmatpush2.msra.mxu0 0.0
    %733 = vmatprep.mubr.f32.mxu0 0.0
    %734 = vmatmul.mubr.f32.gmra.mxu0 %v667
    %v735 = vpop.f32.mrf.mxu0
    %v736 = vadd.f32 0.0, %v735
    %v737 = vpop.f32.mrf.mxu0
    %738 = vdwg.mxu0
    %v740 = vrot.slane %v736, 2
    %v742 = vadd.f32 %v206, %v740
    %v743 = vtanh.pop %v742
    %v745 = vrot.slane %v743, 6
    %747 = vmatprep.subr.mxu0 0.0
    %748 = vmatpush1.msra.mxu0 %v204
    %749 = vmatprep.subr.mxu0 0.0
    %750 = vmatpush1.msra.mxu0 %v203
    %751 = vmatprep.subr.mxu0 0.0
    %752 = vmatpush1.msra.mxu0 %v202
    %753 = vmatprep.subr.mxu0 0.0
    %754 = vmatpush1.msra.mxu0 %v201
    %755 = vmatprep.subr.mxu0 0.0
    %756 = vmatpush1.msra.mxu0 %v200
    %757 = vmatprep.subr.mxu0 0.0
    %758 = vmatpush1.msra.mxu0 %v199
    %759 = vmatprep.subr.mxu0 0.0
    %760 = vmatpush1.msra.mxu0 %v198
    %761 = vmatprep.subr.mxu0 0.0
    %762 = vmatpush1.msra.mxu0 %v197
    %763 = vmatprep.subr.mxu0 0.0
    %764 = vmatpush1.msra.mxu0 %v196
    %765 = vmatprep.subr.mxu0 0.0
    %766 = vmatpush1.msra.mxu0 %v195
    %767 = vmatprep.subr.mxu0 0.0
    %768 = vmatpush1.msra.mxu0 %v194
    %769 = vmatprep.subr.mxu0 0.0
    %770 = vmatpush1.msra.mxu0 %v193
    %771 = vmatprep.subr.mxu0 0.0
    %772 = vmatpush1.msra.mxu0 %v192
    %773 = vmatprep.subr.mxu0 0.0
    %774 = vmatpush1.msra.mxu0 %v191
    %775 = vmatprep.subr.mxu0 0.0
    %776 = vmatpush1.msra.mxu0 %v190
    %777 = vmatprep.subr.mxu0 0.0
    %778 = vmatpush1.msra.mxu0 %v189
    %779 = vmatprep.subr.mxu0 0.0
    %780 = vmatpush2.msra.mxu0 0.0
    %781 = vmatprep.subr.mxu0 0.0
    %782 = vmatpush2.msra.mxu0 0.0
    %783 = vmatprep.subr.mxu0 0.0
    %784 = vmatpush2.msra.mxu0 0.0
    %785 = vmatprep.subr.mxu0 0.0
    %786 = vmatpush2.msra.mxu0 0.0
    %787 = vmatprep.subr.mxu0 0.0
    %788 = vmatpush2.msra.mxu0 0.0
    %789 = vmatprep.subr.mxu0 0.0
    %790 = vmatpush2.msra.mxu0 0.0
    %791 = vmatprep.subr.mxu0 0.0
    %792 = vmatpush2.msra.mxu0 0.0
    %793 = vmatprep.subr.mxu0 0.0
    %794 = vmatpush2.msra.mxu0 0.0
    %795 = vmatprep.subr.mxu0 0.0
    %796 = vmatpush2.msra.mxu0 0.0
    %797 = vmatprep.subr.mxu0 0.0
    %798 = vmatpush2.msra.mxu0 0.0
    %799 = vmatprep.subr.mxu0 0.0
    %800 = vmatpush2.msra.mxu0 0.0
    %801 = vmatprep.subr.mxu0 0.0
    %802 = vmatpush2.msra.mxu0 0.0
    %803 = vmatprep.subr.mxu0 0.0
    %804 = vmatpush2.msra.mxu0 0.0
    %805 = vmatprep.subr.mxu0 0.0
    %806 = vmatpush2.msra.mxu0 0.0
    %807 = vmatprep.subr.mxu0 0.0
    %808 = vmatpush2.msra.mxu0 0.0
    %809 = vmatprep.subr.mxu0 0.0
    %810 = vmatpush2.msra.mxu0 0.0
    %811 = vmatprep.mubr.f32.mxu0 0.0
    %812 = vmatmul.mubr.f32.gmra.mxu0 %v745
    %v813 = vpop.f32.mrf.mxu0
    %v814 = vadd.f32 0.0, %v813
    %v815 = vpop.f32.mrf.mxu0
    %816 = vdwg.mxu0
    %v818 = vrot.slane %v814, 1
    %v820 = vadd.f32 %v206, %v818
    %v821 = vtanh.pop %v820
    %vm822 = vcmask 1040384
    %v823 = vsel %vm822, %v278, %v353
    %vm824 = vcmask 1041408
    %v825 = vsel %vm824, %v823, %v431
    %vm826 = vcmask 1042432
    %v827 = vsel %vm826, %v825, %v509
    %vm828 = vcmask 1043456
    %v829 = vsel %vm828, %v827, %v587
    %vm830 = vcmask 1044480
    %v831 = vsel %vm830, %v829, %v665
    %vm832 = vcmask 1045504
    %v833 = vsel %vm832, %v831, %v743
    %vm834 = vcmask 1046528
    %v835 = vsel %vm834, %v833, %v821
    %836 = vst [vmem:[#allocation9] sm:$0xff] %v835
    %837 = vst [vmem:[#allocation2 - $0x7] sm:$0x80] %v821
    // Predicated region
    $region42: #{tpu_custom_call.1} parent=1 // pred_check
      _
    $region43: #{tpu_custom_call.1} parent=1 // pred_check_branch
      %839 = sbr.rel (0) target = $region45
    $region44: #{tpu_custom_call.1} parent=1 // pred_region
      %s841 = ssub.s32 128, 128
      %842 = vsyncadd [#allocation5], %s841
      %s844 = sshll.u32 [#allocation9], 4
      %s845 = int_to_ptr.vmem [resolvable:$true] %s844
      %847 = dma.vmem_to_hbm [thread:$0]  %s845, 128, %s6, [#allocation5]
    $region45: #{tpu_custom_call.1} parent=1 // pred_fallthru
      _
    // Predicated region
    $region46: #{tpu_custom_call.1} parent=1 // pred_check
      _
    $region47: #{tpu_custom_call.1} parent=1 // pred_check_branch
      %849 = sbr.rel (0) target = $region49
    $region48: #{tpu_custom_call.1} parent=1 // pred_region
      %850 = dma.done [#allocation5], 128
    $region49: #{tpu_custom_call.1} parent=1 // pred_fallthru
      _
    %851 = vsyncpa [#allocation4], 1
    %852 = vsyncpa [#allocation7], 1
    %853 = vsyncpa [#allocation5], 1

</llo_original>
